<compile_context>
chip_gen: v7x
topology: tpu7x:2x2x1
jax: 0.10.0
libtpu: 0.0.40
codegen_flags: <defaults>
</compile_context>

<pallas_src>
import jax
import jax.numpy as jnp
from jax.experimental import pallas as pl
from jax.experimental.pallas import tpu as pltpu


def _mapping_kernel(pid_ref, order_ref, x_ref, w_ref, o_ref):
    b = pl.program_id(0)
    lang = pid_ref[order_ref[b]]          # scalar int32 from SMEM

    @pl.when(lang == -1)
    def _passthrough():
        o_ref[...] = x_ref[...]

    @pl.when(lang != -1)
    def _mapped():
        x = x_ref[0]                      # (tS, D)
        w = w_ref[0]                      # (D, D) = mapping[lang].T (pre-transposed)
        y = jnp.dot(x, w, preferred_element_type=jnp.float32)
        o_ref[0] = y.astype(o_ref.dtype)


def _vmem_plan():
    """(physical VMEM per core, tile budget) — TPU-generation aware."""
    try:
        cap = int(pltpu.get_tpu_info().vmem_capacity_bytes)
    except Exception:
        cap = 64 << 20                    # conservative fallback
    if cap >= (96 << 20):                 # v5e / v6e class: 128 MiB VMEM
        return cap, 96 << 20
    return cap, 36 << 20                  # v7x class: 64 MiB per TensorCore


def _pick_seq_tile(S, D, x_itemsize, w_itemsize, budget_bytes):
    """Largest sequence tile whose double-buffered in/out slabs + double-buffered
    (D, D) weight fit the budget."""
    # sublane packing: f32 -> 8 rows/vreg, bf16 -> 16, int8/fp8 -> 32
    min_rows = {1: 32, 2: 16, 4: 8}.get(x_itemsize, 8)
    w_bytes = 2 * D * D * w_itemsize                      # weight, double-buffered
    remaining = max(budget_bytes - w_bytes, 1 << 20)
    max_ts = max(remaining // max(4 * D * x_itemsize, 1), min_rows)
    if S <= max_ts:
        return S                          # whole sequence per step (tail-free, legal)
    ts = min_rows
    while ts * 2 <= min(max_ts, 8192):
        ts *= 2
    return ts


def multiple_mappings_forward(right_emb, pair_id, mapping, *, group_by_lang=True):
    """Pallas implementation of MultipleMappings.forward (bias=False).

    right_emb: (B, S, D); pair_id: (B, 1) int32 (-1 => passthrough); mapping: (L, D, D).
    """
    B, S, D = right_emb.shape
    L = mapping.shape[0]
    pid = pair_id[:, 0].astype(jnp.int32)                 # (B,)

    # Visit batch elements grouped by language id so consecutive grid steps reuse the
    # resident weight block.  Pure index indirection: data stays in place in HBM.
    if group_by_lang and B > 1:
        order = jnp.argsort(pid).astype(jnp.int32)
    else:
        order = jnp.arange(B, dtype=jnp.int32)

    # One-time HBM transpose of the (small) mapping table => MXU-native weight layout
    # (K on sublane, N on lane) inside the kernel; amortized over all grid steps.
    mapping_t = jnp.swapaxes(mapping, 1, 2)

    x_itemsize = jnp.dtype(right_emb.dtype).itemsize
    w_itemsize = jnp.dtype(mapping.dtype).itemsize
    cap, budget = _vmem_plan()
    tS = _pick_seq_tile(S, D, x_itemsize, w_itemsize, budget)
    n_s = pl.cdiv(S, tS)

    # TODO(synk): for very large D (2*D*D weight slab ~ VMEM), add a grid axis over the
    # weight's output dim N with blocks (1, D, tN) / out (1, tS, tN); every output tile
    # stays single-visit so no f32 accumulator or init/finalize epilogue is needed.
    vmem_est = 4 * tS * D * x_itemsize + 2 * D * D * w_itemsize + (2 << 20)
    vmem_limit = int(min(max(vmem_est, 16 << 20), cap - (4 << 20)))

    grid_spec = pltpu.PrefetchScalarGridSpec(
        num_scalar_prefetch=2,            # pid (B,), order (B,) live in SMEM
        grid=(B, n_s),
        in_specs=[
            # right_emb tile for the b-th *visited* batch element
            pl.BlockSpec((1, tS, D),
                         lambda b, s, pid_ref, order_ref: (order_ref[b], s, 0)),
            # its mapping matrix; constant in s => resident across seq tiles and across
            # consecutive same-language batch elements (Pallas skips the re-DMA).
            # Clamp guards OOB ids; the -1 passthrough case discards it via pl.when.
            pl.BlockSpec((1, D, D),
                         lambda b, s, pid_ref, order_ref: (
                             jnp.clip(pid_ref[order_ref[b]], 0, L - 1), 0, 0)),
        ],
        out_specs=pl.BlockSpec((1, tS, D),
                               lambda b, s, pid_ref, order_ref: (order_ref[b], s, 0)),
    )

    cost = pl.CostEstimate(
        flops=2 * B * S * D * D,
        bytes_accessed=2 * B * S * D * x_itemsize + L * D * D * w_itemsize,
        transcendentals=0)

    # TODO(synk): optional per-language bias (module default is bias=False) not wired in.
    return pl.pallas_call(
        _mapping_kernel,
        out_shape=jax.ShapeDtypeStruct((B, S, D), right_emb.dtype),
        grid_spec=grid_spec,
        compiler_params=pltpu.CompilerParams(
            # no reduction axis and each (b, s) output tile is written exactly once,
            # so both axes can be sharded across TensorCores (v7x dual-TC).
            dimension_semantics=("parallel", "parallel"),
            vmem_limit_bytes=vmem_limit),
        cost_estimate=cost,
    )(pid, order, right_emb, mapping_t)


def _reference_forward(right_emb, pair_id, mapping):
    """Pure-JAX reference matching the PyTorch loop."""
    outs = []
    for i in range(right_emb.shape[0]):
        lang = int(pair_id[i, 0])
        if lang == -1:
            outs.append(right_emb[i])
        else:
            outs.append(right_emb[i] @ mapping[lang].T)
    return jnp.stack(outs, axis=0)


if __name__ == "__main__":
    key = jax.random.PRNGKey(0)
    k_emb, k_map = jax.random.split(key)

    nb_langs, dim = 3, 32
    batch, seq = 4, 8

    # Random (non-identity) init so the matmul path is actually exercised.
    mapping = jax.random.uniform(
        k_map, (nb_langs, dim, dim), dtype=jnp.float32, minval=-0.3, maxval=0.3)
    right_emb = jax.random.normal(k_emb, (batch, seq, dim), dtype=jnp.float32)
    # One -1 entry exercises the passthrough path; duplicate language ids exercise
    # weight-block reuse across consecutive (grouped) grid steps.
    pair_id = jnp.array([[0], [2], [-1], [0]], dtype=jnp.int32)

    ref = _reference_forward(right_emb, pair_id, mapping)

    out = multiple_mappings_forward(right_emb, pair_id, mapping)
    out = jax.block_until_ready(out)
    assert out.shape == right_emb.shape
    assert jnp.allclose(out, ref, atol=1e-5, rtol=1e-5), "mismatch (grouped order)"

    out2 = multiple_mappings_forward(right_emb, pair_id, mapping, group_by_lang=False)
    out2 = jax.block_until_ready(out2)
    assert jnp.allclose(out2, ref, atol=1e-5, rtol=1e-5), "mismatch (natural order)"

    print("KERNEL_OK")
</pallas_src>

<mosaic_0001>
module attributes {stable_mosaic.version = 11 : i64} {
  func.func @_mapping_kernel(%arg0: i32, %arg1: i32, %arg2: memref<4xi32, #tpu.memory_space<smem>>, %arg3: memref<4xi32, #tpu.memory_space<smem>>, %arg4: memref<1x8x32xf32, #tpu.memory_space<vmem>>, %arg5: memref<1x32x32xf32, #tpu.memory_space<vmem>>, %arg6: memref<1x8x32xf32, #tpu.memory_space<vmem>>) attributes {dimension_semantics = [#tpu.dimension_semantics<parallel>, #tpu.dimension_semantics<parallel>], iteration_bounds = array<i64: 4, 1>, scalar_prefetch = 2 : i64, scratch_operands = 0 : i64, tpu.core_type = #tpu.core_type<tc>, window_params = [{transform_indices = @transform_0, window_bounds = array<i64: 1, 8, 32>}, {transform_indices = @transform_1, window_bounds = array<i64: 1, 32, 32>}, {transform_indices = @transform_2, window_bounds = array<i64: 1, 8, 32>}]} {
    %0 = arith.index_cast %arg0 : i32 to index
    %1 = memref.load %arg3[%0] : memref<4xi32, #tpu.memory_space<smem>>
    %2 = arith.index_cast %1 : i32 to index
    %3 = memref.load %arg2[%2] : memref<4xi32, #tpu.memory_space<smem>>
    %c-1_i32 = arith.constant -1 : i32
    %4 = arith.cmpi eq, %3, %c-1_i32 : i32
    %5 = arith.extui %4 : i1 to i32
    %c0_i32 = arith.constant 0 : i32
    %6 = arith.cmpi ne, %5, %c0_i32 : i32
    scf.if %6 {
      %c0 = arith.constant 0 : index
      %c0_2 = arith.constant 0 : index
      %c0_3 = arith.constant 0 : index
      %10 = vector.load %arg4[%c0, %c0_2, %c0_3] : memref<1x8x32xf32, #tpu.memory_space<vmem>>, vector<1x8x32xf32>
      %c0_4 = arith.constant 0 : index
      %c0_5 = arith.constant 0 : index
      %c0_6 = arith.constant 0 : index
      %11 = vector.load %arg6[%c0_4, %c0_5, %c0_6] : memref<1x8x32xf32, #tpu.memory_space<vmem>>, vector<1x8x32xf32>
      tpu.vector_store %arg6[%c0_4, %c0_5, %c0_6], %10 {strides = array<i32>} : memref<1x8x32xf32, #tpu.memory_space<vmem>>, vector<1x8x32xf32>,
    } else {
    }
    %c-1_i32_0 = arith.constant -1 : i32
    %7 = arith.cmpi ne, %3, %c-1_i32_0 : i32
    %8 = arith.extui %7 : i1 to i32
    %c0_i32_1 = arith.constant 0 : i32
    %9 = arith.cmpi ne, %8, %c0_i32_1 : i32
    scf.if %9 {
      %c0 = arith.constant 0 : index
      %c0_2 = arith.constant 0 : index
      %c0_3 = arith.constant 0 : index
      %10 = vector.load %arg4[%c0, %c0_2, %c0_3] : memref<1x8x32xf32, #tpu.memory_space<vmem>>, vector<1x8x32xf32>
      %11 = vector.shape_cast %10 : vector<1x8x32xf32> to vector<8x32xf32>
      %c0_4 = arith.constant 0 : index
      %c0_5 = arith.constant 0 : index
      %c0_6 = arith.constant 0 : index
      %12 = vector.load %arg5[%c0_4, %c0_5, %c0_6] : memref<1x32x32xf32, #tpu.memory_space<vmem>>, vector<1x32x32xf32>
      %13 = vector.shape_cast %12 : vector<1x32x32xf32> to vector<32x32xf32>
      %cst = arith.constant dense<0.000000e+00> : vector<8x32xf32>
      %14 = tpu.matmul %11, %13, %cst {dimension_numbers = #tpu.dot_dimension_numbers<[1], [0], [0], [1], [0, 0, 1, 1], [], []>} : vector<8x32xf32>, vector<32x32xf32>, vector<8x32xf32> -> vector<8x32xf32>
      %c0_7 = arith.constant 0 : index
      %c0_8 = arith.constant 0 : index
      %c0_9 = arith.constant 0 : index
      %15 = vector.load %arg6[%c0_7, %c0_8, %c0_9] : memref<1x8x32xf32, #tpu.memory_space<vmem>>, vector<1x8x32xf32>
      %16 = vector.shape_cast %15 : vector<1x8x32xf32> to vector<8x32xf32>
      %17 = vector.shape_cast %14 : vector<8x32xf32> to vector<1x8x32xf32>
      tpu.vector_store %arg6[%c0_7, %c0_8, %c0_9], %17 {strides = array<i32>} : memref<1x8x32xf32, #tpu.memory_space<vmem>>, vector<1x8x32xf32>,
    } else {
    }
    return
  }
  func.func @transform_0(%arg0: i32, %arg1: i32, %arg2: memref<4xi32, #tpu.memory_space<smem>>, %arg3: memref<4xi32, #tpu.memory_space<smem>>) -> (i32, i32, i32) {
    %0 = arith.index_cast %arg0 : i32 to index
    %1 = memref.load %arg3[%0] : memref<4xi32, #tpu.memory_space<smem>>
    %c0_i32 = arith.constant 0 : i32
    %c0_i32_0 = arith.constant 0 : i32
    return %1, %arg1, %c0_i32 : i32, i32, i32
  }
  func.func @transform_1(%arg0: i32, %arg1: i32, %arg2: memref<4xi32, #tpu.memory_space<smem>>, %arg3: memref<4xi32, #tpu.memory_space<smem>>) -> (i32, i32, i32) {
    %0 = arith.index_cast %arg0 : i32 to index
    %1 = memref.load %arg3[%0] : memref<4xi32, #tpu.memory_space<smem>>
    %2 = arith.index_cast %1 : i32 to index
    %3 = memref.load %arg2[%2] : memref<4xi32, #tpu.memory_space<smem>>
    %c0_i32 = arith.constant 0 : i32
    %c2_i32 = arith.constant 2 : i32
    %4 = arith.maxsi %c0_i32, %3 : i32
    %5 = arith.minsi %c2_i32, %4 : i32
    %c0_i32_0 = arith.constant 0 : i32
    %c0_i32_1 = arith.constant 0 : i32
    %c0_i32_2 = arith.constant 0 : i32
    return %5, %c0_i32_0, %c0_i32_1 : i32, i32, i32
  }
  func.func @transform_2(%arg0: i32, %arg1: i32, %arg2: memref<4xi32, #tpu.memory_space<smem>>, %arg3: memref<4xi32, #tpu.memory_space<smem>>) -> (i32, i32, i32) {
    %0 = arith.index_cast %arg0 : i32 to index
    %1 = memref.load %arg3[%0] : memref<4xi32, #tpu.memory_space<smem>>
    %c0_i32 = arith.constant 0 : i32
    %c0_i32_0 = arith.constant 0 : i32
    return %1, %arg1, %c0_i32 : i32, i32, i32
  }
}

</mosaic_0001>

<llo_original>
// kernel: tpu_custom_call.1
$region0: #{tpu_custom_call.1}
  #allocation0 [shape = 'u32[]', space=smem, size = 0x4, offset = 0x4, fixed_abs, tag = 'smem constant byte address 0x4 - core index']
  #allocation1 [shape = 'u32[144,128]{1,0:T(1,128)}', space=vmem, size = 0x12000, scoped, tag = 'internal scratch']
  #allocation2 [shape = 's32[1]{0}', space=sflag, size = 0x4, scoped, tag = 'scoped memory for tpu_custom_call.1']
  #allocation3 [shape = 'u8[512]{0}', space=smem, size = 0x200, scoped, tag = 'prefetched SMEM operand 0']
  #allocation4 [shape = 'u8[512]{0}', space=smem, size = 0x200, scoped, tag = 'prefetched SMEM operand 1']
  %s0 = inlined_call_operand.hbm [shape: s32[4], index: 0, kind: input, shape index: {}]
  %s1 = inlined_call_operand.vmem [shape: s32[4], index: 1, kind: input, shape index: {}]
  %s2 = inlined_call_operand.hbm [shape: f32[4,8,32], index: 2, kind: input, shape index: {}]
  %s3 = inlined_call_operand.hbm [shape: f32[3,32,32], index: 3, kind: input, shape index: {}]
  %s4 = inlined_call_operand.hbm [shape: f32[4,8,32], index: 4, kind: output, shape index: {}]
  %s5 = sld [smem:[#allocation0]]
  $region57: #{tpu_custom_call.1} parent=0
    _
  %s7 = ssub.s32 1, %s5
  %s8 = scalar_select 0, %s7, %s5
  %10 = dma.hbm_to_smem %s0, 16, [#allocation3], [#allocation2]
  %s11 = sshll.u32 %s1, 4
  %s12 = int_to_ptr.vmem [resolvable:$true] %s11
  %14 = dma.vmem_to_smem %s12, 16, [#allocation4], [#allocation2]
  %15 = dma.done [#allocation2], 32
  %16 = sfence
  $region1: #{tpu_custom_call.1} parent=0
    #allocation5 [shape = 'u8[8192]{0}', space=vmem, size = 0x2000, scoped, tag = 'input window, operand 2']
    #allocation6 [shape = 's32[2]{0}', space=sflag, size = 0x8, scoped, tag = 'scoped memory for tpu_custom_call.1']
    #allocation7 [shape = 's32[2]{0}', space=sflag, size = 0x8, scoped, tag = 'scoped memory for tpu_custom_call.1']
    #allocation8 [shape = 'u8[32768]{0}', space=vmem, size = 0x8000, scoped, tag = 'input window, operand 3']
    #allocation9 [shape = 's32[2]{0}', space=sflag, size = 0x8, scoped, tag = 'scoped memory for tpu_custom_call.1']
    #allocation10 [shape = 'u8[8192]{0}', space=vmem, size = 0x2000, scoped, tag = 'output window, operand 0']
    %17 = vsyncpa [#allocation6], 0
    %s18 = scalar_lea.sflag [#allocation6], 1
    %19 = vsyncpa %s18, 0
    %20 = vsyncpa [#allocation9], 0
    %s21 = scalar_lea.sflag [#allocation9], 1
    %22 = vsyncpa %s21, 0
    %23 = vsyncpa [#allocation7], 0
    %s24 = scalar_lea.sflag [#allocation7], 1
    %25 = vsyncpa %s24, 0
    loop: start=0, step=1, limit=6
    $region2: #{tpu_custom_call.1} parent=1 // loop_pre_header
      _
    $region3: #{tpu_custom_call.1} parent=1 // loop_header
      %s27 = sphi 0, %s31
      %p28 = scmp.ge.s32.totalorder %s27, 6
      %s34 = sphi 0, %s46
      %s35 = sphi 0, %s42
      %s36 = sphi 0, %s34
      %s37 = sphi 0, %s35
      %s38 = sphi 0, %s36
      %s39 = sphi 0, %s37
      %s53 = sphi 0, %s55
      %s56 = sphi 0, %s53
      %s57 = sphi 0, %s56
      %s73 = sphi 0, %s57
      %s91 = sphi 0, %s93
      %s94 = sphi 0, %s91
      %s95 = sphi 0, %s94
      %s111 = sphi 0, %s95
      %s121 = sphi 0, %s123
      %s124 = sphi 0, %s121
      %s125 = sphi 0, %s124
      %s141 = sphi 0, %s125
    $region4: #{tpu_custom_call.1} parent=1 // loop_header_branch
      %30 = sbr.rel (%p28) target = $region8
    $region5: #{tpu_custom_call.1} parent=1 // loop_body
      %s32 = ssub.s32 %s27, 1
      %s33 = ssub.s32 %s27, 2
      %s40 = sadd.s32 1, %s35
      %p41 = scmp.ge.s32.totalorder %s40, 1
      %s42 = scalar_select %p41, 0, %s40
      %s43 = sadd.s32 1, %s34
      %s44 = scalar_select %p41, %s43, %s34
      %p45 = scmp.ge.s32.totalorder %s44, 4
      %s46 = scalar_select %p45, 0, %s44
      %s47 = sld [smem:[#allocation4 + %s34]]
      %s48 = sld [smem:[#allocation4 + %s46]]
      %s49 = ssub.s32 %s47, %s48
      %s50 = ssub.s32 %s35, %s42
      %s51 = sor.u32 %s49, %s50
      %p52 = scmp.eq.s32.totalorder %s51, 0
      %s54 = sadd.s32 %s53, 1
      %s55 = scalar_select %p52, %s53, %s54
      %p58 = pneg %p52
      %p59 = scmp.eq.s32.totalorder %s27, 3
      %p60 = por %p58, %p59
      %p61 = scmp.ne.s32.totalorder %s53, %s56
      %p62 = scmp.eq.s32.totalorder %s27, 0
      %p63 = por %p61, %p62
      %p64 = scmp.ne.s32.totalorder %s53, %s56
      %p65 = scmp.eq.s32.totalorder %s32, 3
      %p66 = por %p64, %p65
      %p67 = scmp.ne.s32.totalorder %s56, %s57
      %p68 = scmp.eq.s32.totalorder %s32, 0
      %p69 = por %p67, %p68
      %p70 = scmp.ne.s32.totalorder %s56, %s57
      %p71 = scmp.eq.s32.totalorder %s33, 3
      %p72 = por %p70, %p71
      %p74 = scmp.ne.s32.totalorder %s57, %s73
      %p75 = scmp.eq.s32.totalorder %s33, 0
      %p76 = por %p74, %p75
      %s77 = sld [smem:[#allocation4 + %s34]]
      %s78 = sld [smem:[#allocation3 + %s77]]
      %p79 = scmp.gt.s32.totalorder %s78, 0
      %s80 = scalar_select %p79, %s78, 0
      %p81 = scmp.lt.s32.totalorder %s80, 2
      %s82 = scalar_select %p81, %s80, 2
      %s83 = sld [smem:[#allocation4 + %s46]]
      %s84 = sld [smem:[#allocation3 + %s83]]
      %p85 = scmp.gt.s32.totalorder %s84, 0
      %s86 = scalar_select %p85, %s84, 0
      %p87 = scmp.lt.s32.totalorder %s86, 2
      %s88 = scalar_select %p87, %s86, 2
      %s89 = ssub.s32 %s82, %s88
      %p90 = scmp.eq.s32.totalorder %s89, 0
      %s92 = sadd.s32 %s91, 1
      %s93 = scalar_select %p90, %s91, %s92
      %p96 = pneg %p90
      %p97 = scmp.eq.s32.totalorder %s27, 3
      %p98 = por %p96, %p97
      %p99 = scmp.ne.s32.totalorder %s91, %s94
      %p100 = scmp.eq.s32.totalorder %s27, 0
      %p101 = por %p99, %p100
      %p102 = scmp.ne.s32.totalorder %s91, %s94
      %p103 = scmp.eq.s32.totalorder %s32, 3
      %p104 = por %p102, %p103
      %p105 = scmp.ne.s32.totalorder %s94, %s95
      %p106 = scmp.eq.s32.totalorder %s32, 0
      %p107 = por %p105, %p106
      %p108 = scmp.ne.s32.totalorder %s94, %s95
      %p109 = scmp.eq.s32.totalorder %s33, 3
      %p110 = por %p108, %p109
      %p112 = scmp.ne.s32.totalorder %s95, %s111
      %p113 = scmp.eq.s32.totalorder %s33, 0
      %p114 = por %p112, %p113
      %s115 = sld [smem:[#allocation4 + %s34]]
      %s116 = sld [smem:[#allocation4 + %s46]]
      %s117 = ssub.s32 %s115, %s116
      %s118 = ssub.s32 %s35, %s42
      %s119 = sor.u32 %s117, %s118
      %p120 = scmp.eq.s32.totalorder %s119, 0
      %s122 = sadd.s32 %s121, 1
      %s123 = scalar_select %p120, %s121, %s122
      %p126 = pneg %p120
      %p127 = scmp.eq.s32.totalorder %s27, 3
      %p128 = por %p126, %p127
      %p129 = scmp.ne.s32.totalorder %s121, %s124
      %p130 = scmp.eq.s32.totalorder %s27, 0
      %p131 = por %p129, %p130
      %p132 = scmp.ne.s32.totalorder %s121, %s124
      %p133 = scmp.eq.s32.totalorder %s32, 3
      %p134 = por %p132, %p133
      %p135 = scmp.ne.s32.totalorder %s124, %s125
      %p136 = scmp.eq.s32.totalorder %s32, 0
      %p137 = por %p135, %p136
      %p138 = scmp.ne.s32.totalorder %s124, %s125
      %p139 = scmp.eq.s32.totalorder %s33, 3
      %p140 = por %p138, %p139
      %p142 = scmp.ne.s32.totalorder %s125, %s141
      %p143 = scmp.eq.s32.totalorder %s33, 0
      %p144 = por %p142, %p143
      %p145 = scmp.le.s32.totalorder 1, %s27
      %p146 = scmp.lt.s32.totalorder %s27, 5
      %p147 = pnand %p145, %p146
      %p148 = pneg %p147
      // Predicated region
      $region9: #{tpu_custom_call.1} parent=5 // pred_check
        _
      $region10: #{tpu_custom_call.1} parent=5 // pred_check_branch
        %150 = sbr.rel (%p147) target = $region12
      $region11: #{tpu_custom_call.1} parent=5 // pred_region
        %s151 = ssub.s32 %s27, 1
      $region12: #{tpu_custom_call.1} parent=5 // pred_fallthru
        _
      %p152 = scmp.lt.s32.totalorder %s27, 4
      // Predicated region
      $region13: #{tpu_custom_call.1} parent=5 // pred_check
        %p153 = pneg %p152
      $region14: #{tpu_custom_call.1} parent=5 // pred_check_branch
        %155 = sbr.rel (%p153) target = $region16
      $region15: #{tpu_custom_call.1} parent=5 // pred_region
        // Predicated region
        $region17: #{tpu_custom_call.1} parent=15 // pred_check
          %p156 = pneg %p63
        $region18: #{tpu_custom_call.1} parent=15 // pred_check_branch
          %158 = sbr.rel (%p156) target = $region20
        $region19: #{tpu_custom_call.1} parent=15 // pred_region
          %s159 = sand.u32 %s53, 1
          %s160 = scalar_lea.sflag [#allocation6], %s159
          %s161 = sand.u32 %s53, 1
          %s162 = smul.addr %s161, 8
          %s163 = scalar_lea.vmem [#allocation5], %s162
          %s164 = sld [smem:[#allocation4 + %s34]]
          %s166 = ssub.s32 128, 128
          %167 = vsyncadd %s160, %s166
          %s168 = sadd.s32 %s35, %s164
          %s169 = smul.addr %s168, 128
          %s170 = scalar_lea.hbm %s2, %s169
          %s172 = sshll.u32 %s163, 4
          %s173 = int_to_ptr.vmem [resolvable:$true] %s172
          %175 = dma.hbm_to_vmem [thread:$0]  %s170, 128, %s173, %s160
        $region20: #{tpu_custom_call.1} parent=15 // pred_fallthru
          _
        // Predicated region
        $region21: #{tpu_custom_call.1} parent=15 // pred_check
          %p176 = pneg %p101
        $region22: #{tpu_custom_call.1} parent=15 // pred_check_branch
          %178 = sbr.rel (%p176) target = $region24
        $region23: #{tpu_custom_call.1} parent=15 // pred_region
          %s179 = sand.u32 %s91, 1
          %s180 = scalar_lea.sflag [#allocation9], %s179
          %s181 = sand.u32 %s91, 1
          %s182 = smul.addr %s181, 32
          %s183 = scalar_lea.vmem [#allocation8], %s182
          %s184 = sld [smem:[#allocation4 + %s34]]
          %s185 = sld [smem:[#allocation3 + %s184]]
          %p186 = scmp.gt.s32.totalorder %s185, 0
          %s187 = scalar_select %p186, %s185, 0
          %p188 = scmp.lt.s32.totalorder %s187, 2
          %s189 = scalar_select %p188, %s187, 2
          %s191 = ssub.s32 512, 512
          %192 = vsyncadd %s180, %s191
          %s193 = smul.addr %s189, 4
          %s194 = smul.addr %s193, 128
          %s195 = scalar_lea.hbm %s3, %s194
          %s196 = sshll.u32 %s183, 4
          %s197 = int_to_ptr.vmem [resolvable:$true] %s196
          %202 = dma.hbm_to_vmem [thread:$0]  %s195, 512, %s197, %s180, 128, 128, 8
        $region24: #{tpu_custom_call.1} parent=15 // pred_fallthru
          _
      $region16: #{tpu_custom_call.1} parent=5 // pred_fallthru
        _
      %p203 = scmp.le.s32.totalorder 1, %s27
      %p204 = scmp.lt.s32.totalorder %s27, 5
      %p205 = pnand %p203, %p204
      %p206 = pneg %p205
      // Predicated region
      $region25: #{tpu_custom_call.1} parent=5 // pred_check
        _
      $region26: #{tpu_custom_call.1} parent=5 // pred_check_branch
        %208 = sbr.rel (%p205) target = $region28
      $region27: #{tpu_custom_call.1} parent=5 // pred_region
        %s209 = ssub.s32 %s27, 1
        %s210 = sand.u32 %s56, 1
        %s211 = scalar_lea.sflag [#allocation6], %s210
        %s212 = sand.u32 %s56, 1
        %s213 = smul.addr %s212, 8
        %s214 = scalar_lea.vmem [#allocation5], %s213
        // Predicated region
        $region29: #{tpu_custom_call.1} parent=27 // pred_check
          %p215 = pneg %p69
        $region30: #{tpu_custom_call.1} parent=27 // pred_check_branch
          %217 = sbr.rel (%p215) target = $region32
        $region31: #{tpu_custom_call.1} parent=27 // pred_region
          %218 = dma.done %s211, 128
        $region32: #{tpu_custom_call.1} parent=27 // pred_fallthru
          _
        %s219 = sand.u32 %s94, 1
        %s220 = scalar_lea.sflag [#allocation9], %s219
        %s221 = sand.u32 %s94, 1
        %s222 = smul.addr %s221, 32
        %s223 = scalar_lea.vmem [#allocation8], %s222
        // Predicated region
        $region33: #{tpu_custom_call.1} parent=27 // pred_check
          %p224 = pneg %p107
        $region34: #{tpu_custom_call.1} parent=27 // pred_check_branch
          %226 = sbr.rel (%p224) target = $region36
        $region35: #{tpu_custom_call.1} parent=27 // pred_region
          %227 = dma.done %s220, 512
        $region36: #{tpu_custom_call.1} parent=27 // pred_fallthru
          _
        %s228 = sand.u32 %s56, 1
        %s229 = scalar_lea.sflag [#allocation6], %s228
        %s230 = sand.u32 %s56, 1
        %s231 = smul.addr %s230, 8
        %s232 = scalar_lea.vmem [#allocation5], %s231
        %p233 = pneg %p69
        %p234 = pneg %p66
        %s235 = sand.u32 %s94, 1
        %s236 = scalar_lea.sflag [#allocation9], %s235
        %s237 = sand.u32 %s94, 1
        %s238 = smul.addr %s237, 32
        %s239 = scalar_lea.vmem [#allocation8], %s238
        %p240 = pneg %p107
        %p241 = pneg %p104
        %p242 = pneg %p137
        %p243 = pneg %p134
        %s244 = sand.u32 %s124, 1
        %s245 = scalar_lea.sflag [#allocation7], %s244
        %s246 = sand.u32 %s124, 1
        %s247 = smul.addr %s246, 8
        %s248 = scalar_lea.vmem [#allocation10], %s247
        %s249 = sld [smem:[#allocation4 + %s36]]
        %s250 = sld [smem:[#allocation4 + %s36]]
        %s251 = sld [smem:[#allocation3 + %s250]]
        %p252 = scmp.gt.s32.totalorder %s251, 0
        %s253 = scalar_select %p252, %s251, 0
        %p254 = scmp.lt.s32.totalorder %s253, 2
        %s255 = scalar_select %p254, %s253, 2
        %s256 = sld [smem:[#allocation4 + %s36]]
        %s257 = sld [smem:[#allocation4 + %s36]]
        %s258 = sld [smem:[#allocation3 + %s257]]
        %p259 = scmp.eq.s32.totalorder %s258, 4294967295
        // Predicated region
        $region37: #{tpu_custom_call.1} parent=27 // pred_check
          %p260 = pneg %p259
        $region38: #{tpu_custom_call.1} parent=27 // pred_check_branch
          %262 = sbr.rel (%p260) target = $region40
        $region39: #{tpu_custom_call.1} parent=27 // pred_region
          %v263 = vld [vmem:[%s214] sm:$0xff]
          %vm264 = vcmask 261120
          %265 = vst.msk [vmem:[%s248] sm:$0xff] %vm264, %v263
        $region40: #{tpu_custom_call.1} parent=27 // pred_fallthru
          _
        %p266 = scmp.ne.s32.totalorder %s258, 4294967295
        // Predicated region
        $region41: #{tpu_custom_call.1} parent=27 // pred_check
          %p267 = pneg %p266
        $region42: #{tpu_custom_call.1} parent=27 // pred_check_branch
          %269 = sbr.rel (%p267) target = $region44
        $region43: #{tpu_custom_call.1} parent=27 // pred_region
          %v270 = vld [vmem:[%s214] sm:$0xff]
          %v271 = vld [vmem:[%s223] sm:$0xff]
          %v272 = vld [vmem:[%s223 + $0x8] sm:$0xff]
          %v273 = vld [vmem:[%s223 + $0x10] sm:$0xff]
          %v274 = vld [vmem:[%s223 + $0x18] sm:$0xff]
          %vm275 = vcmask 261120
          %v277 = vsel %vm275, %v270, 0
          %279 = vmatprep.subr.mxu0 0.0
          %280 = vmatpush1.msra.mxu0 %v271
          %281 = vmatprep.subr.mxu0 0.0
          %282 = vmatpush1.msra.mxu0 %v272
          %283 = vmatprep.subr.mxu0 0.0
          %284 = vmatpush1.msra.mxu0 %v273
          %285 = vmatprep.subr.mxu0 0.0
          %286 = vmatpush1.msra.mxu0 %v274
          %287 = vmatprep.subr.mxu0 0.0
          %288 = vmatpush1.msra.mxu0 0.0
          %289 = vmatprep.subr.mxu0 0.0
          %290 = vmatpush1.msra.mxu0 0.0
          %291 = vmatprep.subr.mxu0 0.0
          %292 = vmatpush1.msra.mxu0 0.0
          %293 = vmatprep.subr.mxu0 0.0
          %294 = vmatpush1.msra.mxu0 0.0
          %295 = vmatprep.subr.mxu0 0.0
          %296 = vmatpush1.msra.mxu0 0.0
          %297 = vmatprep.subr.mxu0 0.0
          %298 = vmatpush1.msra.mxu0 0.0
          %299 = vmatprep.subr.mxu0 0.0
          %300 = vmatpush1.msra.mxu0 0.0
          %301 = vmatprep.subr.mxu0 0.0
          %302 = vmatpush1.msra.mxu0 0.0
          %303 = vmatprep.subr.mxu0 0.0
          %304 = vmatpush1.msra.mxu0 0.0
          %305 = vmatprep.subr.mxu0 0.0
          %306 = vmatpush1.msra.mxu0 0.0
          %307 = vmatprep.subr.mxu0 0.0
          %308 = vmatpush1.msra.mxu0 0.0
          %309 = vmatprep.subr.mxu0 0.0
          %310 = vmatpush1.msra.mxu0 0.0
          %311 = vmatprep.subr.mxu0 0.0
          %312 = vmatpush1.msra.mxu0 0.0
          %313 = vmatprep.subr.mxu0 0.0
          %314 = vmatpush1.msra.mxu0 0.0
          %315 = vmatprep.subr.mxu0 0.0
          %316 = vmatpush1.msra.mxu0 0.0
          %317 = vmatprep.subr.mxu0 0.0
          %318 = vmatpush1.msra.mxu0 0.0
          %319 = vmatprep.subr.mxu0 0.0
          %320 = vmatpush1.msra.mxu0 0.0
          %321 = vmatprep.subr.mxu0 0.0
          %322 = vmatpush1.msra.mxu0 0.0
          %323 = vmatprep.subr.mxu0 0.0
          %324 = vmatpush1.msra.mxu0 0.0
          %325 = vmatprep.subr.mxu0 0.0
          %326 = vmatpush1.msra.mxu0 0.0
          %327 = vmatprep.subr.mxu0 0.0
          %328 = vmatpush1.msra.mxu0 0.0
          %329 = vmatprep.subr.mxu0 0.0
          %330 = vmatpush1.msra.mxu0 0.0
          %331 = vmatprep.subr.mxu0 0.0
          %332 = vmatpush1.msra.mxu0 0.0
          %333 = vmatprep.subr.mxu0 0.0
          %334 = vmatpush1.msra.mxu0 0.0
          %335 = vmatprep.subr.mxu0 0.0
          %336 = vmatpush1.msra.mxu0 0.0
          %337 = vmatprep.subr.mxu0 0.0
          %338 = vmatpush1.msra.mxu0 0.0
          %339 = vmatprep.subr.mxu0 0.0
          %340 = vmatpush1.msra.mxu0 0.0
          %341 = vmatprep.subr.mxu0 0.0
          %342 = vmatpush1.msra.mxu0 0.0
          %343 = vmatprep.mubr.f32.mxu0 0.0
          %344 = vmatmul.mubr.f32.gmra.mrb[0].mxu0 %v277
          %v345 = vpop.f32.mrb[0].mxu0
          %v346 = vadd.f32 0.0, %v345
          %v347 = vpop.f32.mrb[0].mxu0
          %348 = vdwg.mxu0
          %349 = vst.msk [vmem:[%s248] sm:$0xff] %vm275, %v346
        $region44: #{tpu_custom_call.1} parent=27 // pred_fallthru
          _
        %s350 = sand.u32 %s124, 1
        %s351 = scalar_lea.sflag [#allocation7], %s350
        %s352 = sand.u32 %s124, 1
        %s353 = smul.addr %s352, 8
        %s354 = scalar_lea.vmem [#allocation10], %s353
        // Predicated region
        $region45: #{tpu_custom_call.1} parent=27 // pred_check
          %p355 = pneg %p134
        $region46: #{tpu_custom_call.1} parent=27 // pred_check_branch
          %357 = sbr.rel (%p355) target = $region48
        $region47: #{tpu_custom_call.1} parent=27 // pred_region
          %s358 = sld [smem:[#allocation4 + %s36]]
          %s360 = ssub.s32 128, 128
          %361 = vsyncadd %s351, %s360
          %s362 = sadd.s32 %s37, %s358
          %s363 = smul.addr %s362, 128
          %s364 = scalar_lea.hbm %s4, %s363
          %s366 = sshll.u32 %s354, 4
          %s367 = int_to_ptr.vmem [resolvable:$true] %s366
          %369 = dma.vmem_to_hbm [thread:$0]  %s367, 128, %s364, %s351
        $region48: #{tpu_custom_call.1} parent=27 // pred_fallthru
          _
      $region28: #{tpu_custom_call.1} parent=5 // pred_fallthru
        _
      %p370 = scmp.le.s32.totalorder 2, %s27
      // Predicated region
      $region49: #{tpu_custom_call.1} parent=5 // pred_check
        %p371 = pneg %p370
      $region50: #{tpu_custom_call.1} parent=5 // pred_check_branch
        %373 = sbr.rel (%p371) target = $region52
      $region51: #{tpu_custom_call.1} parent=5 // pred_region
        %s374 = ssub.s32 %s27, 2
        // Predicated region
        $region53: #{tpu_custom_call.1} parent=51 // pred_check
          %p375 = pneg %p140
        $region54: #{tpu_custom_call.1} parent=51 // pred_check_branch
          %377 = sbr.rel (%p375) target = $region56
        $region55: #{tpu_custom_call.1} parent=51 // pred_region
          %s378 = sand.u32 %s125, 1
          %s379 = scalar_lea.sflag [#allocation7], %s378
          %s380 = sand.u32 %s125, 1
          %s381 = smul.addr %s380, 8
          %s382 = scalar_lea.vmem [#allocation10], %s381
          %383 = dma.done %s379, 128
        $region56: #{tpu_custom_call.1} parent=51 // pred_fallthru
          _
      $region52: #{tpu_custom_call.1} parent=5 // pred_fallthru
        _
    $region6: #{tpu_custom_call.1} parent=1 // loop_footer
      %s31 = sadd.s32 1, %s27
    $region7: #{tpu_custom_call.1} parent=1 // loop_footer_branch
      %26 = sbr.rel target = $region3
    $region8: #{tpu_custom_call.1} parent=1 // loop_exit
      _
    %384 = vsyncpa [#allocation6], 1
    %s385 = scalar_lea.sflag [#allocation6], 1
    %386 = vsyncpa %s385, 1
    %387 = vsyncpa [#allocation9], 1
    %s388 = scalar_lea.sflag [#allocation9], 1
    %389 = vsyncpa %s388, 1
    %390 = vsyncpa [#allocation7], 1
    %s391 = scalar_lea.sflag [#allocation7], 1
    %392 = vsyncpa %s391, 1

</llo_original>
